<compile_context>
chip_gen: v7x
topology: tpu7x:2x2x1
jax: 0.10.0
libtpu: 0.0.40
codegen_flags: <defaults>
</compile_context>

<pallas_src>
import jax
import jax.numpy as jnp
from jax.experimental import pallas as pl
from jax.experimental.pallas import tpu as pltpu


def _make_mce_kernel(H, W):
    HW = H * W

    def mce_kernel(x_ref, ex_ref, w1t_ref, coef_ref, bias1_ref, w3t_ref, b3_ref,
                   out_ref):
        # x_ref / ex_ref / out_ref : (Nb, C, H*W)   lane-dense activations
        # w1t_ref  : (C, Cr)   conv1 weight (bn1-folded), transposed
        # coef_ref : (10, Cr)  per-stat coefficients (3x3 taps folded, /HW folded)
        # bias1_ref: (1, Cr)   bias term (b1 tap-count contribution minus b1)
        # w3t_ref  : (Cr, C)   conv3 weight (bn3-folded), transposed (lane-dense out)
        # b3_ref   : (1, C)
        Nb, C, _ = x_ref.shape
        Cr = w1t_ref.shape[1]

        x = x_ref[...].astype(jnp.float32)     # (Nb, C, HW)
        ex = ex_ref[...].astype(jnp.float32)   # (Nb, C, HW)

        # ---- per-channel spatial statistics of x (and ex total) -------------
        lane = jax.lax.broadcasted_iota(jnp.int32, (1, 1, HW), 2)
        col = lane % W
        total_x = jnp.sum(x, axis=-1)                                       # (Nb, C)
        firstcol_x = jnp.sum(jnp.where(col == 0, x, 0.0), axis=-1)          # (Nb, C)
        lastcol_x = jnp.sum(jnp.where(col == W - 1, x, 0.0), axis=-1)       # (Nb, C)
        total_ex = jnp.sum(ex, axis=-1)                                     # (Nb, C)

        # first / last spatial rows and the 4 corners come from two tiny slices
        col_w = jax.lax.broadcasted_iota(jnp.int32, (1, 1, W), 2)
        row_first = x[:, :, :W]                  # (Nb, C, W)  spatial row 0
        row_last = x[:, :, (H - 1) * W:]         # (Nb, C, W)  spatial row H-1
        firstrow_x = jnp.sum(row_first, axis=-1)
        lastrow_x = jnp.sum(row_last, axis=-1)
        c_00 = jnp.sum(jnp.where(col_w == 0, row_first, 0.0), axis=-1)      # x[0, 0]
        c_0w = jnp.sum(jnp.where(col_w == W - 1, row_first, 0.0), axis=-1)  # x[0, W-1]
        c_h0 = jnp.sum(jnp.where(col_w == 0, row_last, 0.0), axis=-1)       # x[H-1, 0]
        c_hw = jnp.sum(jnp.where(col_w == W - 1, row_last, 0.0), axis=-1)   # x[H-1, W-1]

        # order must match the coefficient rows built in the wrapper
        stats = jnp.stack(
            [total_x, lastrow_x, firstrow_x, lastcol_x, firstcol_x,
             c_hw, c_h0, c_0w, c_00, total_ex], axis=1)                     # (Nb, 10, C)

        # ---- tiny matmuls: 1x1 convs applied to pooled statistics ------------
        bott_stats = jnp.dot(stats.reshape(Nb * 10, C), w1t_ref[...],
                             preferred_element_type=jnp.float32)            # (Nb*10, Cr)
        bott_stats = bott_stats.reshape(Nb, 10, Cr)

        y_pool = jnp.sum(bott_stats * coef_ref[...][None, :, :], axis=1)    # (Nb, Cr)
        y_pool = y_pool + bias1_ref[...]

        y = jnp.dot(y_pool, w3t_ref[...],
                    preferred_element_type=jnp.float32) + b3_ref[...]       # (Nb, C)
        y = jax.nn.sigmoid(y) - 0.5

        # ---- residual gating: out = x + x * y  (y constant over spatial) -----
        out_ref[...] = (x * (1.0 + y[:, :, None])).astype(out_ref.dtype)

    return mce_kernel


def _pick_block_n(N, per_sample_bytes, max_block_bytes=4 << 20):
    """Largest divisor of N that keeps >=2 grid steps (v7x: 2 TCs) and fits cap."""
    best = 1
    for bn in range(1, N + 1):
        if N % bn:
            continue
        if N >= 2 and N // bn < 2:
            continue
        if bn * per_sample_bytes > max_block_bytes:
            continue
        best = bn
    return best


def mce_forward_pallas(x, ex, time_step, params, eps=1e-5, block_n=None):
    """x, ex: (N, C, H, W).  time_step: python int."""
    if time_step == 0:
        return x

    N, C, H, W = x.shape
    HW = H * W
    f32 = jnp.float32

    # ---- fold BN1 into conv1 (eval mode, exact) ----
    scale1 = params["bn1_gamma"] / jnp.sqrt(params["bn1_var"] + eps)        # (Cr,)
    w1_eff = params["conv1_w"][:, :, 0, 0].astype(f32) * scale1[:, None]    # (Cr, C)
    b1 = params["bn1_beta"] - params["bn1_mean"] * scale1                   # (Cr,)
    w1t = jnp.asarray(w1_eff.T, f32)                                        # (C, Cr)
    Cr = w1_eff.shape[0]

    # ---- depthwise 3x3 reduced to coefficients on 10 pooled statistics ----
    # mean over HxW of the zero-padded 3x3 depthwise conv of the bottleneck
    # equals a weighted sum of rectangle sums of the bottleneck; those in turn
    # are w1 @ (rectangle sums of x) + b1 * |rect|.  Inclusion-exclusion gives
    # rect sums from: total, last/first row, last/first col, 4 corners.
    w2 = params["conv2_w"][:, 0, :, :].astype(f32)                          # (Cr, 3, 3)
    coef = jnp.stack([
        jnp.sum(w2, axis=(1, 2)),           # 0: total_x
        -jnp.sum(w2[:, 0, :], axis=1),      # 1: last row excluded (dy=0 taps)
        -jnp.sum(w2[:, 2, :], axis=1),      # 2: first row excluded (dy=2 taps)
        -jnp.sum(w2[:, :, 0], axis=1),      # 3: last col excluded (dx=0 taps)
        -jnp.sum(w2[:, :, 2], axis=1),      # 4: first col excluded (dx=2 taps)
        w2[:, 0, 0],                        # 5: corner (H-1, W-1)
        w2[:, 0, 2],                        # 6: corner (H-1, 0)
        w2[:, 2, 0],                        # 7: corner (0,   W-1)
        w2[:, 2, 2],                        # 8: corner (0,   0)
        -jnp.ones((Cr,), f32),              # 9: -mean(bn1(conv1(ex))) term
    ], axis=0) / float(HW)                                                  # (10, Cr)

    row_cnt = jnp.array([H - 1, H, H - 1], f32)
    col_cnt = jnp.array([W - 1, W, W - 1], f32)
    counts = row_cnt[:, None] * col_cnt[None, :]                            # (3, 3)
    b1_contrib = b1 * jnp.sum(w2 * counts[None, :, :], axis=(1, 2)) / float(HW)
    bias1 = (b1_contrib - b1)[None, :].astype(f32)                          # (1, Cr)

    # ---- fold BN3 into conv3 ----
    scale3 = params["bn3_gamma"] / jnp.sqrt(params["bn3_var"] + eps)        # (C,)
    w3_eff = params["conv3_w"][:, :, 0, 0].astype(f32) * scale3[:, None]    # (C, Cr)
    w3t = jnp.asarray(w3_eff.T, f32)                                        # (Cr, C)
    b3 = (params["bn3_beta"] - params["bn3_mean"] * scale3)[None, :].astype(f32)  # (1, C)

    # ---- lane-dense activation layout: (N, C, H*W) ----
    x2 = x.reshape(N, C, HW)
    ex2 = ex.reshape(N, C, HW)

    per_sample_bytes = C * HW * x.dtype.itemsize
    if block_n is None:
        block_n = _pick_block_n(N, per_sample_bytes)
    grid_n = N // block_n

    # x, ex, out double-buffered per step + weights, with headroom
    bytes_per_step = 3 * 2 * block_n * per_sample_bytes
    vmem_limit = int(min(max(bytes_per_step * 1.5 + (2 << 20), 16 << 20), 48 << 20))

    cost = pl.CostEstimate(
        flops=int(N * (12 * C * HW + 20 * C * Cr + 2 * Cr * C)),
        transcendentals=int(N * C),
        bytes_accessed=int(3 * N * per_sample_bytes),
    )

    kernel = _make_mce_kernel(H, W)

    out2 = pl.pallas_call(
        kernel,
        out_shape=jax.ShapeDtypeStruct((N, C, HW), x.dtype),
        grid_spec=pltpu.PrefetchScalarGridSpec(
            num_scalar_prefetch=0,
            grid=(grid_n,),
            in_specs=[
                pl.BlockSpec((block_n, C, HW), lambda n: (n, 0, 0)),  # x
                pl.BlockSpec((block_n, C, HW), lambda n: (n, 0, 0)),  # ex
                pl.BlockSpec((C, Cr), lambda n: (0, 0)),              # w1t (bn1-folded)
                pl.BlockSpec((10, Cr), lambda n: (0, 0)),             # coef (taps folded)
                pl.BlockSpec((1, Cr), lambda n: (0, 0)),              # bias1
                pl.BlockSpec((Cr, C), lambda n: (0, 0)),              # w3t (bn3-folded)
                pl.BlockSpec((1, C), lambda n: (0, 0)),               # b3
            ],
            out_specs=pl.BlockSpec((block_n, C, HW), lambda n: (n, 0, 0)),
        ),
        compiler_params=pltpu.CompilerParams(
            dimension_semantics=("parallel",),
            vmem_limit_bytes=vmem_limit,
        ),
        cost_estimate=cost,
    )(x2, ex2, w1t, coef, bias1, w3t, b3)

    return out2.reshape(N, C, H, W)


def mce_forward_ref(x, ex, time_step, params, eps=1e-5):
    """Pure-JAX reference (independent of the kernel's pooled-stat formulation)."""
    if time_step == 0:
        return x
    Cr = params["conv1_w"].shape[0]

    def bn(z, g, b, m, v):
        return (z - m[None, :, None, None]) / jnp.sqrt(v[None, :, None, None] + eps) \
            * g[None, :, None, None] + b[None, :, None, None]

    def conv1x1(z, w):
        return jax.lax.conv_general_dilated(
            z, w, (1, 1), "VALID", dimension_numbers=("NCHW", "OIHW", "NCHW"))

    bott = bn(conv1x1(x, params["conv1_w"]),
              params["bn1_gamma"], params["bn1_beta"],
              params["bn1_mean"], params["bn1_var"])
    conv_b = jax.lax.conv_general_dilated(
        bott, params["conv2_w"], (1, 1), ((1, 1), (1, 1)),
        dimension_numbers=("NCHW", "OIHW", "NCHW"), feature_group_count=Cr)
    ex_b = bn(conv1x1(ex, params["conv1_w"]),
              params["bn1_gamma"], params["bn1_beta"],
              params["bn1_mean"], params["bn1_var"])
    diff = conv_b - ex_b
    y = jnp.mean(diff, axis=(2, 3), keepdims=True)
    y = conv1x1(y, params["conv3_w"])
    y = bn(y, params["bn3_gamma"], params["bn3_beta"],
           params["bn3_mean"], params["bn3_var"])
    y = jax.nn.sigmoid(y) - 0.5
    return x + x * y


def init_params(key, channel, reduction=8):
    cr = channel // reduction
    ks = jax.random.split(key, 11)
    return {
        "conv1_w": jax.random.normal(ks[0], (cr, channel, 1, 1), jnp.float32) * 0.2,
        "conv2_w": jax.random.normal(ks[1], (cr, 1, 3, 3), jnp.float32) * 0.2,
        "conv3_w": jax.random.normal(ks[2], (channel, cr, 1, 1), jnp.float32) * 0.2,
        "bn1_gamma": 1.0 + 0.1 * jax.random.normal(ks[3], (cr,), jnp.float32),
        "bn1_beta": 0.1 * jax.random.normal(ks[4], (cr,), jnp.float32),
        "bn1_mean": 0.1 * jax.random.normal(ks[5], (cr,), jnp.float32),
        "bn1_var": 1.0 + 0.1 * jnp.abs(jax.random.normal(ks[6], (cr,), jnp.float32)),
        "bn3_gamma": 1.0 + 0.1 * jax.random.normal(ks[7], (channel,), jnp.float32),
        "bn3_beta": 0.1 * jax.random.normal(ks[8], (channel,), jnp.float32),
        "bn3_mean": 0.1 * jax.random.normal(ks[9], (channel,), jnp.float32),
        "bn3_var": 1.0 + 0.1 * jnp.abs(jax.random.normal(ks[10], (channel,), jnp.float32)),
    }


if __name__ == "__main__":
    N, C, H, W = 2, 16, 16, 16
    reduction = 8

    key = jax.random.PRNGKey(0)
    kx, kex, kp = jax.random.split(key, 3)
    x = jax.random.normal(kx, (N, C, H, W), jnp.float32)
    ex = jax.random.normal(kex, (N, C, H, W), jnp.float32)
    params = init_params(kp, C, reduction)

    # time_step == 0 branch: identity (handled in wrapper, no kernel launch)
    out0 = mce_forward_pallas(x, ex, 0, params)
    assert out0 is x

    # time_step > 0: run the Pallas kernel
    out = jax.block_until_ready(mce_forward_pallas(x, ex, 1, params))
    ref = jax.block_until_ready(mce_forward_ref(x, ex, 1, params))

    assert out.shape == (N, C, H, W)
    max_err = float(jnp.abs(out - ref).max())
    assert jnp.allclose(out, ref, atol=2e-4, rtol=2e-4), max_err

    print("KERNEL_OK")
</pallas_src>

<mosaic_0001>
module attributes {stable_mosaic.version = 11 : i64} {
  func.func @mce_kernel(%arg0: i32, %arg1: memref<1x16x256xf32, #tpu.memory_space<vmem>>, %arg2: memref<1x16x256xf32, #tpu.memory_space<vmem>>, %arg3: memref<16x2xf32, #tpu.memory_space<vmem>>, %arg4: memref<10x2xf32, #tpu.memory_space<vmem>>, %arg5: memref<1x2xf32, #tpu.memory_space<vmem>>, %arg6: memref<2x16xf32, #tpu.memory_space<vmem>>, %arg7: memref<1x16xf32, #tpu.memory_space<vmem>>, %arg8: memref<1x16x256xf32, #tpu.memory_space<vmem>>) attributes {dimension_semantics = [#tpu.dimension_semantics<parallel>], iteration_bounds = array<i64: 2>, scalar_prefetch = 0 : i64, scratch_operands = 0 : i64, tpu.core_type = #tpu.core_type<tc>, window_params = [{transform_indices = @transform_0, window_bounds = array<i64: 1, 16, 256>}, {transform_indices = @transform_1, window_bounds = array<i64: 1, 16, 256>}, {pipeline_mode = #tpu.pipeline_mode<synchronous>, transform_indices = @transform_2, window_bounds = array<i64: 16, 2>}, {pipeline_mode = #tpu.pipeline_mode<synchronous>, transform_indices = @transform_3, window_bounds = array<i64: 10, 2>}, {pipeline_mode = #tpu.pipeline_mode<synchronous>, transform_indices = @transform_4, window_bounds = array<i64: 1, 2>}, {pipeline_mode = #tpu.pipeline_mode<synchronous>, transform_indices = @transform_5, window_bounds = array<i64: 2, 16>}, {pipeline_mode = #tpu.pipeline_mode<synchronous>, transform_indices = @transform_6, window_bounds = array<i64: 1, 16>}, {transform_indices = @transform_7, window_bounds = array<i64: 1, 16, 256>}]} {
    %c0 = arith.constant 0 : index
    %c0_0 = arith.constant 0 : index
    %c0_1 = arith.constant 0 : index
    %0 = vector.load %arg1[%c0, %c0_0, %c0_1] : memref<1x16x256xf32, #tpu.memory_space<vmem>>, vector<1x16x256xf32>
    %c0_2 = arith.constant 0 : index
    %c0_3 = arith.constant 0 : index
    %c0_4 = arith.constant 0 : index
    %1 = vector.load %arg2[%c0_2, %c0_3, %c0_4] : memref<1x16x256xf32, #tpu.memory_space<vmem>>, vector<1x16x256xf32>
    %2 = tpu.iota {dimensions = array<i32: 2>} : vector<1x1x256xi32>
    %c16_i32 = arith.constant 16 : i32
    %c0_i32 = arith.constant 0 : i32
    %3 = arith.cmpi eq, %c16_i32, %c0_i32 : i32
    %c1_i32 = arith.constant 1 : i32
    %4 = arith.select %3, %c1_i32, %c16_i32 : i32
    %5 = vector.broadcast %4 : i32 to vector<1x1x256xi32>
    %6 = arith.remsi %2, %5 : vector<1x1x256xi32>
    %c0_i32_5 = arith.constant 0 : i32
    %7 = vector.broadcast %c0_i32_5 : i32 to vector<1x1x256xi32>
    %8 = arith.cmpi ne, %6, %7 : vector<1x1x256xi32>
    %c0_i32_6 = arith.constant 0 : i32
    %9 = vector.broadcast %c0_i32_6 : i32 to vector<1x1x256xi32>
    %10 = arith.cmpi slt, %6, %9 : vector<1x1x256xi32>
    %c0_i32_7 = arith.constant 0 : i32
    %11 = arith.cmpi slt, %4, %c0_i32_7 : i32
    %12 = vector.broadcast %11 : i1 to vector<1x1x256xi1>
    %13 = vector.broadcast %12 : vector<1x1x256xi1> to vector<1x1x256xi1>
    %14 = arith.xori %10, %13 : vector<1x1x256xi1>
    %15 = arith.andi %14, %8 : vector<1x1x256xi1>
    %16 = vector.broadcast %4 : i32 to vector<1x1x256xi32>
    %17 = arith.addi %6, %16 : vector<1x1x256xi32>
    %18 = arith.select %15, %17, %6 : vector<1x1x256xi1>, vector<1x1x256xi32>
    %cst = arith.constant dense<0.000000e+00> : vector<1x16xf32>
    %19 = vector.multi_reduction <add>, %0, %cst [2] : vector<1x16x256xf32> to vector<1x16xf32>
    %c0_i32_8 = arith.constant 0 : i32
    %20 = vector.broadcast %c0_i32_8 : i32 to vector<1x1x256xi32>
    %21 = arith.cmpi eq, %18, %20 : vector<1x1x256xi32>
    %cst_9 = arith.constant 0.000000e+00 : f32
    %22 = vector.shape_cast %21 : vector<1x1x256xi1> to vector<1x1x256xi1>
    %23 = vector.broadcast %22 : vector<1x1x256xi1> to vector<1x16x256xi1>
    %24 = vector.broadcast %cst_9 : f32 to vector<1x16x256xf32>
    %25 = arith.select %23, %0, %24 : vector<1x16x256xi1>, vector<1x16x256xf32>
    %cst_10 = arith.constant dense<0.000000e+00> : vector<1x16xf32>
    %26 = vector.multi_reduction <add>, %25, %cst_10 [2] : vector<1x16x256xf32> to vector<1x16xf32>
    %c15_i32 = arith.constant 15 : i32
    %27 = vector.broadcast %c15_i32 : i32 to vector<1x1x256xi32>
    %28 = arith.cmpi eq, %18, %27 : vector<1x1x256xi32>
    %cst_11 = arith.constant 0.000000e+00 : f32
    %29 = vector.shape_cast %28 : vector<1x1x256xi1> to vector<1x1x256xi1>
    %30 = vector.broadcast %29 : vector<1x1x256xi1> to vector<1x16x256xi1>
    %31 = vector.broadcast %cst_11 : f32 to vector<1x16x256xf32>
    %32 = arith.select %30, %0, %31 : vector<1x16x256xi1>, vector<1x16x256xf32>
    %cst_12 = arith.constant dense<0.000000e+00> : vector<1x16xf32>
    %33 = vector.multi_reduction <add>, %32, %cst_12 [2] : vector<1x16x256xf32> to vector<1x16xf32>
    %cst_13 = arith.constant dense<0.000000e+00> : vector<1x16xf32>
    %34 = vector.multi_reduction <add>, %1, %cst_13 [2] : vector<1x16x256xf32> to vector<1x16xf32>
    %35 = tpu.iota {dimensions = array<i32: 2>} : vector<1x1x16xi32>
    %36 = vector.extract_strided_slice %0 {offsets = [0, 0, 0], sizes = [1, 16, 16], strides = [1, 1, 1]} : vector<1x16x256xf32> to vector<1x16x16xf32>
    %37 = vector.extract_strided_slice %0 {offsets = [0, 0, 240], sizes = [1, 16, 16], strides = [1, 1, 1]} : vector<1x16x256xf32> to vector<1x16x16xf32>
    %cst_14 = arith.constant dense<0.000000e+00> : vector<1x16xf32>
    %38 = vector.multi_reduction <add>, %36, %cst_14 [2] : vector<1x16x16xf32> to vector<1x16xf32>
    %cst_15 = arith.constant dense<0.000000e+00> : vector<1x16xf32>
    %39 = vector.multi_reduction <add>, %37, %cst_15 [2] : vector<1x16x16xf32> to vector<1x16xf32>
    %c0_i32_16 = arith.constant 0 : i32
    %40 = vector.broadcast %c0_i32_16 : i32 to vector<1x1x16xi32>
    %41 = arith.cmpi eq, %35, %40 : vector<1x1x16xi32>
    %cst_17 = arith.constant 0.000000e+00 : f32
    %42 = vector.shape_cast %41 : vector<1x1x16xi1> to vector<1x1x16xi1>
    %43 = vector.broadcast %42 : vector<1x1x16xi1> to vector<1x16x16xi1>
    %44 = vector.broadcast %cst_17 : f32 to vector<1x16x16xf32>
    %45 = arith.select %43, %36, %44 : vector<1x16x16xi1>, vector<1x16x16xf32>
    %cst_18 = arith.constant dense<0.000000e+00> : vector<1x16xf32>
    %46 = vector.multi_reduction <add>, %45, %cst_18 [2] : vector<1x16x16xf32> to vector<1x16xf32>
    %c15_i32_19 = arith.constant 15 : i32
    %47 = vector.broadcast %c15_i32_19 : i32 to vector<1x1x16xi32>
    %48 = arith.cmpi eq, %35, %47 : vector<1x1x16xi32>
    %cst_20 = arith.constant 0.000000e+00 : f32
    %49 = vector.shape_cast %48 : vector<1x1x16xi1> to vector<1x1x16xi1>
    %50 = vector.broadcast %49 : vector<1x1x16xi1> to vector<1x16x16xi1>
    %51 = vector.broadcast %cst_20 : f32 to vector<1x16x16xf32>
    %52 = arith.select %50, %36, %51 : vector<1x16x16xi1>, vector<1x16x16xf32>
    %cst_21 = arith.constant dense<0.000000e+00> : vector<1x16xf32>
    %53 = vector.multi_reduction <add>, %52, %cst_21 [2] : vector<1x16x16xf32> to vector<1x16xf32>
    %c0_i32_22 = arith.constant 0 : i32
    %54 = vector.broadcast %c0_i32_22 : i32 to vector<1x1x16xi32>
    %55 = arith.cmpi eq, %35, %54 : vector<1x1x16xi32>
    %cst_23 = arith.constant 0.000000e+00 : f32
    %56 = vector.shape_cast %55 : vector<1x1x16xi1> to vector<1x1x16xi1>
    %57 = vector.broadcast %56 : vector<1x1x16xi1> to vector<1x16x16xi1>
    %58 = vector.broadcast %cst_23 : f32 to vector<1x16x16xf32>
    %59 = arith.select %57, %37, %58 : vector<1x16x16xi1>, vector<1x16x16xf32>
    %cst_24 = arith.constant dense<0.000000e+00> : vector<1x16xf32>
    %60 = vector.multi_reduction <add>, %59, %cst_24 [2] : vector<1x16x16xf32> to vector<1x16xf32>
    %c15_i32_25 = arith.constant 15 : i32
    %61 = vector.broadcast %c15_i32_25 : i32 to vector<1x1x16xi32>
    %62 = arith.cmpi eq, %35, %61 : vector<1x1x16xi32>
    %cst_26 = arith.constant 0.000000e+00 : f32
    %63 = vector.shape_cast %62 : vector<1x1x16xi1> to vector<1x1x16xi1>
    %64 = vector.broadcast %63 : vector<1x1x16xi1> to vector<1x16x16xi1>
    %65 = vector.broadcast %cst_26 : f32 to vector<1x16x16xf32>
    %66 = arith.select %64, %37, %65 : vector<1x16x16xi1>, vector<1x16x16xf32>
    %cst_27 = arith.constant dense<0.000000e+00> : vector<1x16xf32>
    %67 = vector.multi_reduction <add>, %66, %cst_27 [2] : vector<1x16x16xf32> to vector<1x16xf32>
    %68 = vector.shape_cast %19 : vector<1x16xf32> to vector<1x1x16xf32>
    %69 = vector.shape_cast %39 : vector<1x16xf32> to vector<1x1x16xf32>
    %70 = vector.shape_cast %38 : vector<1x16xf32> to vector<1x1x16xf32>
    %71 = vector.shape_cast %33 : vector<1x16xf32> to vector<1x1x16xf32>
    %72 = vector.shape_cast %26 : vector<1x16xf32> to vector<1x1x16xf32>
    %73 = vector.shape_cast %67 : vector<1x16xf32> to vector<1x1x16xf32>
    %74 = vector.shape_cast %60 : vector<1x16xf32> to vector<1x1x16xf32>
    %75 = vector.shape_cast %53 : vector<1x16xf32> to vector<1x1x16xf32>
    %76 = vector.shape_cast %46 : vector<1x16xf32> to vector<1x1x16xf32>
    %77 = vector.shape_cast %34 : vector<1x16xf32> to vector<1x1x16xf32>
    %78 = tpu.concatenate %68, %69, %70, %71, %72, %73, %74, %75, %76, %77 in 1 : vector<1x1x16xf32>, vector<1x1x16xf32>, vector<1x1x16xf32>, vector<1x1x16xf32>, vector<1x1x16xf32>, vector<1x1x16xf32>, vector<1x1x16xf32>, vector<1x1x16xf32>, vector<1x1x16xf32>, vector<1x1x16xf32> -> vector<1x10x16xf32>
    %79 = vector.shape_cast %78 : vector<1x10x16xf32> to vector<10x16xf32>
    %c0_28 = arith.constant 0 : index
    %c0_29 = arith.constant 0 : index
    %80 = vector.load %arg3[%c0_28, %c0_29] : memref<16x2xf32, #tpu.memory_space<vmem>>, vector<16x2xf32>
    %cst_30 = arith.constant dense<0.000000e+00> : vector<10x2xf32>
    %81 = tpu.matmul %79, %80, %cst_30 {dimension_numbers = #tpu.dot_dimension_numbers<[1], [0], [0], [1], [0, 0, 1, 1], [], []>} : vector<10x16xf32>, vector<16x2xf32>, vector<10x2xf32> -> vector<10x2xf32>
    %82 = vector.shape_cast %81 : vector<10x2xf32> to vector<1x10x2xf32>
    %c0_31 = arith.constant 0 : index
    %c0_32 = arith.constant 0 : index
    %83 = vector.load %arg4[%c0_31, %c0_32] : memref<10x2xf32, #tpu.memory_space<vmem>>, vector<10x2xf32>
    %84 = vector.shape_cast %83 : vector<10x2xf32> to vector<1x10x2xf32>
    %85 = arith.mulf %82, %84 : vector<1x10x2xf32>
    %cst_33 = arith.constant dense<0.000000e+00> : vector<1x2xf32>
    %86 = vector.multi_reduction <add>, %85, %cst_33 [1] : vector<1x10x2xf32> to vector<1x2xf32>
    %c0_34 = arith.constant 0 : index
    %c0_35 = arith.constant 0 : index
    %87 = vector.load %arg5[%c0_34, %c0_35] : memref<1x2xf32, #tpu.memory_space<vmem>>, vector<1x2xf32>
    %88 = arith.addf %86, %87 : vector<1x2xf32>
    %c0_36 = arith.constant 0 : index
    %c0_37 = arith.constant 0 : index
    %89 = vector.load %arg6[%c0_36, %c0_37] : memref<2x16xf32, #tpu.memory_space<vmem>>, vector<2x16xf32>
    %cst_38 = arith.constant dense<0.000000e+00> : vector<1x16xf32>
    %90 = tpu.matmul %88, %89, %cst_38 {dimension_numbers = #tpu.dot_dimension_numbers<[1], [0], [0], [1], [0, 0, 1, 1], [], []>} : vector<1x2xf32>, vector<2x16xf32>, vector<1x16xf32> -> vector<1x16xf32>
    %c0_39 = arith.constant 0 : index
    %c0_40 = arith.constant 0 : index
    %91 = vector.load %arg7[%c0_39, %c0_40] : memref<1x16xf32, #tpu.memory_space<vmem>>, vector<1x16xf32>
    %92 = arith.addf %90, %91 : vector<1x16xf32>
    %93 = arith.negf %92 : vector<1x16xf32>
    %94 = math.exp %93 : vector<1x16xf32>
    %cst_41 = arith.constant 1.000000e+00 : f32
    %95 = vector.broadcast %cst_41 : f32 to vector<1x16xf32>
    %96 = arith.addf %95, %94 : vector<1x16xf32>
    %97 = arith.divf %95, %96 : vector<1x16xf32>
    %cst_42 = arith.constant 5.000000e-01 : f32
    %98 = vector.broadcast %cst_42 : f32 to vector<1x16xf32>
    %99 = arith.subf %97, %98 : vector<1x16xf32>
    %100 = vector.shape_cast %99 : vector<1x16xf32> to vector<1x16x1xf32>
    %cst_43 = arith.constant 1.000000e+00 : f32
    %101 = vector.broadcast %cst_43 : f32 to vector<1x16x1xf32>
    %102 = arith.addf %101, %100 : vector<1x16x1xf32>
    %103 = vector.broadcast %102 : vector<1x16x1xf32> to vector<1x16x256xf32>
    %104 = arith.mulf %0, %103 : vector<1x16x256xf32>
    %c0_44 = arith.constant 0 : index
    %c0_45 = arith.constant 0 : index
    %c0_46 = arith.constant 0 : index
    %105 = vector.load %arg8[%c0_44, %c0_45, %c0_46] : memref<1x16x256xf32, #tpu.memory_space<vmem>>, vector<1x16x256xf32>
    tpu.vector_store %arg8[%c0_44, %c0_45, %c0_46], %104 {strides = array<i32>} : memref<1x16x256xf32, #tpu.memory_space<vmem>>, vector<1x16x256xf32>,
    return
  }
  func.func @transform_0(%arg0: i32) -> (i32, i32, i32) {
    %c0_i32 = arith.constant 0 : i32
    %c0_i32_0 = arith.constant 0 : i32
    %c0_i32_1 = arith.constant 0 : i32
    return %arg0, %c0_i32, %c0_i32_0 : i32, i32, i32
  }
  func.func @transform_1(%arg0: i32) -> (i32, i32, i32) {
    %c0_i32 = arith.constant 0 : i32
    %c0_i32_0 = arith.constant 0 : i32
    %c0_i32_1 = arith.constant 0 : i32
    return %arg0, %c0_i32, %c0_i32_0 : i32, i32, i32
  }
  func.func @transform_2(%arg0: i32) -> (i32, i32) {
    %c0_i32 = arith.constant 0 : i32
    %c0_i32_0 = arith.constant 0 : i32
    %c0_i32_1 = arith.constant 0 : i32
    return %c0_i32, %c0_i32_0 : i32, i32
  }
  func.func @transform_3(%arg0: i32) -> (i32, i32) {
    %c0_i32 = arith.constant 0 : i32
    %c0_i32_0 = arith.constant 0 : i32
    %c0_i32_1 = arith.constant 0 : i32
    return %c0_i32, %c0_i32_0 : i32, i32
  }
  func.func @transform_4(%arg0: i32) -> (i32, i32) {
    %c0_i32 = arith.constant 0 : i32
    %c0_i32_0 = arith.constant 0 : i32
    %c0_i32_1 = arith.constant 0 : i32
    return %c0_i32, %c0_i32_0 : i32, i32
  }
  func.func @transform_5(%arg0: i32) -> (i32, i32) {
    %c0_i32 = arith.constant 0 : i32
    %c0_i32_0 = arith.constant 0 : i32
    %c0_i32_1 = arith.constant 0 : i32
    return %c0_i32, %c0_i32_0 : i32, i32
  }
  func.func @transform_6(%arg0: i32) -> (i32, i32) {
    %c0_i32 = arith.constant 0 : i32
    %c0_i32_0 = arith.constant 0 : i32
    %c0_i32_1 = arith.constant 0 : i32
    return %c0_i32, %c0_i32_0 : i32, i32
  }
  func.func @transform_7(%arg0: i32) -> (i32, i32, i32) {
    %c0_i32 = arith.constant 0 : i32
    %c0_i32_0 = arith.constant 0 : i32
    %c0_i32_1 = arith.constant 0 : i32
    return %arg0, %c0_i32, %c0_i32_0 : i32, i32, i32
  }
}

</mosaic_0001>

<llo_original>
// kernel: tpu_custom_call.1
$region0: #{tpu_custom_call.1}
  #allocation0 [shape = 'u32[]', space=smem, size = 0x4, offset = 0x4, fixed_abs, tag = 'smem constant byte address 0x4 - core index']
  #allocation1 [shape = 'u32[144,128]{1,0:T(1,128)}', space=vmem, size = 0x12000, scoped, tag = 'internal scratch']
  %s0 = inlined_call_operand.hbm [shape: f32[2,16,256], index: 0, kind: input, shape index: {}]
  %s1 = inlined_call_operand.hbm [shape: f32[2,16,256], index: 1, kind: input, shape index: {}]
  %s2 = inlined_call_operand.vmem [shape: f32[16,2], index: 2, kind: input, shape index: {}]
  %s3 = inlined_call_operand.vmem [shape: f32[10,2], index: 3, kind: input, shape index: {}]
  %s4 = inlined_call_operand.vmem [shape: f32[1,2], index: 4, kind: input, shape index: {}]
  %s5 = inlined_call_operand.vmem [shape: f32[2,16], index: 5, kind: input, shape index: {}]
  %s6 = inlined_call_operand.vmem [shape: f32[1,16], index: 6, kind: input, shape index: {}]
  %s7 = inlined_call_operand.hbm [shape: f32[2,16,256], index: 7, kind: output, shape index: {}]
  %s8 = sld [smem:[#allocation0]]
  $region69: #{tpu_custom_call.1} parent=0
    _
  %s10 = ssub.s32 1, %s8
  %s11 = scalar_select 0, %s10, %s8
  $region1: #{tpu_custom_call.1} parent=0
    #allocation2 [shape = 'u8[32768]{0}', space=vmem, size = 0x8000, scoped, tag = 'input window, operand 0']
    #allocation3 [shape = 's32[2]{0}', space=sflag, size = 0x8, scoped, tag = 'scoped memory for tpu_custom_call.1']
    #allocation4 [shape = 's32[2]{0}', space=sflag, size = 0x8, scoped, tag = 'scoped memory for tpu_custom_call.1']
    #allocation5 [shape = 'u8[32768]{0}', space=vmem, size = 0x8000, scoped, tag = 'input window, operand 1']
    #allocation6 [shape = 's32[2]{0}', space=sflag, size = 0x8, scoped, tag = 'scoped memory for tpu_custom_call.1']
    #allocation7 [shape = 'u8[32768]{0}', space=vmem, size = 0x8000, scoped, tag = 'output window, operand 0']
    %12 = vsyncpa [#allocation3], 0
    %s13 = scalar_lea.sflag [#allocation3], 1
    %14 = vsyncpa %s13, 0
    %15 = vsyncpa [#allocation6], 0
    %s16 = scalar_lea.sflag [#allocation6], 1
    %17 = vsyncpa %s16, 0
    %18 = vsyncpa [#allocation4], 0
    %s19 = scalar_lea.sflag [#allocation4], 1
    %20 = vsyncpa %s19, 0
    loop: start=0, step=1, limit=4
    $region2: #{tpu_custom_call.1} parent=1 // loop_pre_header
      _
    $region3: #{tpu_custom_call.1} parent=1 // loop_header
      %s22 = sphi 0, %s26
      %p23 = scmp.ge.s32.totalorder %s22, 4
      %s32 = sphi 0, %s34
      %s35 = sphi 0, %s32
      %s36 = sphi 0, %s35
      %s52 = sphi 0, %s36
      %s58 = sphi 0, %s60
      %s61 = sphi 0, %s58
      %s62 = sphi 0, %s61
      %s78 = sphi 0, %s62
      %s82 = sphi 0, %s82
      %s84 = sphi 0, %s82
      %s85 = sphi 0, %s84
      %s99 = sphi 0, %s85
      %s103 = sphi 0, %s103
      %s105 = sphi 0, %s103
      %s106 = sphi 0, %s105
      %s120 = sphi 0, %s106
      %s124 = sphi 0, %s124
      %s126 = sphi 0, %s124
      %s127 = sphi 0, %s126
      %s141 = sphi 0, %s127
      %s145 = sphi 0, %s145
      %s147 = sphi 0, %s145
      %s148 = sphi 0, %s147
      %s162 = sphi 0, %s148
      %s166 = sphi 0, %s166
      %s168 = sphi 0, %s166
      %s169 = sphi 0, %s168
      %s183 = sphi 0, %s169
      %s189 = sphi 0, %s191
      %s192 = sphi 0, %s189
      %s193 = sphi 0, %s192
      %s209 = sphi 0, %s193
    $region4: #{tpu_custom_call.1} parent=1 // loop_header_branch
      %25 = sbr.rel (%p23) target = $region8
    $region5: #{tpu_custom_call.1} parent=1 // loop_body
      %s27 = ssub.s32 %s22, 1
      %s28 = ssub.s32 %s22, 2
      %s29 = sadd.s32 %s22, 1
      %s30 = ssub.s32 %s22, %s29
      %p31 = scmp.eq.s32.totalorder %s30, 0
      %s33 = sadd.s32 %s32, 1
      %s34 = scalar_select %p31, %s32, %s33
      %p37 = pneg %p31
      %p38 = scmp.eq.s32.totalorder %s22, 1
      %p39 = por %p37, %p38
      %p40 = scmp.ne.s32.totalorder %s32, %s35
      %p41 = scmp.eq.s32.totalorder %s22, 0
      %p42 = por %p40, %p41
      %p43 = scmp.ne.s32.totalorder %s32, %s35
      %p44 = scmp.eq.s32.totalorder %s27, 1
      %p45 = por %p43, %p44
      %p46 = scmp.ne.s32.totalorder %s35, %s36
      %p47 = scmp.eq.s32.totalorder %s27, 0
      %p48 = por %p46, %p47
      %p49 = scmp.ne.s32.totalorder %s35, %s36
      %p50 = scmp.eq.s32.totalorder %s28, 1
      %p51 = por %p49, %p50
      %p53 = scmp.ne.s32.totalorder %s36, %s52
      %p54 = scmp.eq.s32.totalorder %s28, 0
      %p55 = por %p53, %p54
      %s56 = ssub.s32 %s22, %s29
      %p57 = scmp.eq.s32.totalorder %s56, 0
      %s59 = sadd.s32 %s58, 1
      %s60 = scalar_select %p57, %s58, %s59
      %p63 = pneg %p57
      %p64 = scmp.eq.s32.totalorder %s22, 1
      %p65 = por %p63, %p64
      %p66 = scmp.ne.s32.totalorder %s58, %s61
      %p67 = scmp.eq.s32.totalorder %s22, 0
      %p68 = por %p66, %p67
      %p69 = scmp.ne.s32.totalorder %s58, %s61
      %p70 = scmp.eq.s32.totalorder %s27, 1
      %p71 = por %p69, %p70
      %p72 = scmp.ne.s32.totalorder %s61, %s62
      %p73 = scmp.eq.s32.totalorder %s27, 0
      %p74 = por %p72, %p73
      %p75 = scmp.ne.s32.totalorder %s61, %s62
      %p76 = scmp.eq.s32.totalorder %s28, 1
      %p77 = por %p75, %p76
      %p79 = scmp.ne.s32.totalorder %s62, %s78
      %p80 = scmp.eq.s32.totalorder %s28, 0
      %p81 = por %p79, %p80
      %s83 = sadd.s32 %s82, 1
      %p86 = scmp.eq.s32.totalorder %s22, 1
      %p87 = scmp.ne.s32.totalorder %s82, %s84
      %p88 = scmp.eq.s32.totalorder %s22, 0
      %p89 = por %p87, %p88
      %p90 = scmp.ne.s32.totalorder %s82, %s84
      %p91 = scmp.eq.s32.totalorder %s27, 1
      %p92 = por %p90, %p91
      %p93 = scmp.ne.s32.totalorder %s84, %s85
      %p94 = scmp.eq.s32.totalorder %s27, 0
      %p95 = por %p93, %p94
      %p96 = scmp.ne.s32.totalorder %s84, %s85
      %p97 = scmp.eq.s32.totalorder %s28, 1
      %p98 = por %p96, %p97
      %p100 = scmp.ne.s32.totalorder %s85, %s99
      %p101 = scmp.eq.s32.totalorder %s28, 0
      %p102 = por %p100, %p101
      %s104 = sadd.s32 %s103, 1
      %p107 = scmp.eq.s32.totalorder %s22, 1
      %p108 = scmp.ne.s32.totalorder %s103, %s105
      %p109 = scmp.eq.s32.totalorder %s22, 0
      %p110 = por %p108, %p109
      %p111 = scmp.ne.s32.totalorder %s103, %s105
      %p112 = scmp.eq.s32.totalorder %s27, 1
      %p113 = por %p111, %p112
      %p114 = scmp.ne.s32.totalorder %s105, %s106
      %p115 = scmp.eq.s32.totalorder %s27, 0
      %p116 = por %p114, %p115
      %p117 = scmp.ne.s32.totalorder %s105, %s106
      %p118 = scmp.eq.s32.totalorder %s28, 1
      %p119 = por %p117, %p118
      %p121 = scmp.ne.s32.totalorder %s106, %s120
      %p122 = scmp.eq.s32.totalorder %s28, 0
      %p123 = por %p121, %p122
      %s125 = sadd.s32 %s124, 1
      %p128 = scmp.eq.s32.totalorder %s22, 1
      %p129 = scmp.ne.s32.totalorder %s124, %s126
      %p130 = scmp.eq.s32.totalorder %s22, 0
      %p131 = por %p129, %p130
      %p132 = scmp.ne.s32.totalorder %s124, %s126
      %p133 = scmp.eq.s32.totalorder %s27, 1
      %p134 = por %p132, %p133
      %p135 = scmp.ne.s32.totalorder %s126, %s127
      %p136 = scmp.eq.s32.totalorder %s27, 0
      %p137 = por %p135, %p136
      %p138 = scmp.ne.s32.totalorder %s126, %s127
      %p139 = scmp.eq.s32.totalorder %s28, 1
      %p140 = por %p138, %p139
      %p142 = scmp.ne.s32.totalorder %s127, %s141
      %p143 = scmp.eq.s32.totalorder %s28, 0
      %p144 = por %p142, %p143
      %s146 = sadd.s32 %s145, 1
      %p149 = scmp.eq.s32.totalorder %s22, 1
      %p150 = scmp.ne.s32.totalorder %s145, %s147
      %p151 = scmp.eq.s32.totalorder %s22, 0
      %p152 = por %p150, %p151
      %p153 = scmp.ne.s32.totalorder %s145, %s147
      %p154 = scmp.eq.s32.totalorder %s27, 1
      %p155 = por %p153, %p154
      %p156 = scmp.ne.s32.totalorder %s147, %s148
      %p157 = scmp.eq.s32.totalorder %s27, 0
      %p158 = por %p156, %p157
      %p159 = scmp.ne.s32.totalorder %s147, %s148
      %p160 = scmp.eq.s32.totalorder %s28, 1
      %p161 = por %p159, %p160
      %p163 = scmp.ne.s32.totalorder %s148, %s162
      %p164 = scmp.eq.s32.totalorder %s28, 0
      %p165 = por %p163, %p164
      %s167 = sadd.s32 %s166, 1
      %p170 = scmp.eq.s32.totalorder %s22, 1
      %p171 = scmp.ne.s32.totalorder %s166, %s168
      %p172 = scmp.eq.s32.totalorder %s22, 0
      %p173 = por %p171, %p172
      %p174 = scmp.ne.s32.totalorder %s166, %s168
      %p175 = scmp.eq.s32.totalorder %s27, 1
      %p176 = por %p174, %p175
      %p177 = scmp.ne.s32.totalorder %s168, %s169
      %p178 = scmp.eq.s32.totalorder %s27, 0
      %p179 = por %p177, %p178
      %p180 = scmp.ne.s32.totalorder %s168, %s169
      %p181 = scmp.eq.s32.totalorder %s28, 1
      %p182 = por %p180, %p181
      %p184 = scmp.ne.s32.totalorder %s169, %s183
      %p185 = scmp.eq.s32.totalorder %s28, 0
      %p186 = por %p184, %p185
      %s187 = ssub.s32 %s22, %s29
      %p188 = scmp.eq.s32.totalorder %s187, 0
      %s190 = sadd.s32 %s189, 1
      %s191 = scalar_select %p188, %s189, %s190
      %p194 = pneg %p188
      %p195 = scmp.eq.s32.totalorder %s22, 1
      %p196 = por %p194, %p195
      %p197 = scmp.ne.s32.totalorder %s189, %s192
      %p198 = scmp.eq.s32.totalorder %s22, 0
      %p199 = por %p197, %p198
      %p200 = scmp.ne.s32.totalorder %s189, %s192
      %p201 = scmp.eq.s32.totalorder %s27, 1
      %p202 = por %p200, %p201
      %p203 = scmp.ne.s32.totalorder %s192, %s193
      %p204 = scmp.eq.s32.totalorder %s27, 0
      %p205 = por %p203, %p204
      %p206 = scmp.ne.s32.totalorder %s192, %s193
      %p207 = scmp.eq.s32.totalorder %s28, 1
      %p208 = por %p206, %p207
      %p210 = scmp.ne.s32.totalorder %s193, %s209
      %p211 = scmp.eq.s32.totalorder %s28, 0
      %p212 = por %p210, %p211
      %p213 = scmp.le.s32.totalorder 1, %s22
      %p214 = scmp.lt.s32.totalorder %s22, 3
      %p215 = pnand %p213, %p214
      %p216 = pneg %p215
      // Predicated region
      $region9: #{tpu_custom_call.1} parent=5 // pred_check
        _
      $region10: #{tpu_custom_call.1} parent=5 // pred_check_branch
        %218 = sbr.rel (%p215) target = $region12
      $region11: #{tpu_custom_call.1} parent=5 // pred_region
        %s219 = ssub.s32 %s22, 1
        // Predicated region
        $region13: #{tpu_custom_call.1} parent=11 // pred_check
          %p220 = pneg %p95
        $region14: #{tpu_custom_call.1} parent=11 // pred_check_branch
          %222 = sbr.rel (%p220) target = $region16
        $region15: #{tpu_custom_call.1} parent=11 // pred_region
          _
        $region16: #{tpu_custom_call.1} parent=11 // pred_fallthru
          _
        // Predicated region
        $region17: #{tpu_custom_call.1} parent=11 // pred_check
          %p223 = pneg %p116
        $region18: #{tpu_custom_call.1} parent=11 // pred_check_branch
          %225 = sbr.rel (%p223) target = $region20
        $region19: #{tpu_custom_call.1} parent=11 // pred_region
          _
        $region20: #{tpu_custom_call.1} parent=11 // pred_fallthru
          _
        // Predicated region
        $region21: #{tpu_custom_call.1} parent=11 // pred_check
          %p226 = pneg %p137
        $region22: #{tpu_custom_call.1} parent=11 // pred_check_branch
          %228 = sbr.rel (%p226) target = $region24
        $region23: #{tpu_custom_call.1} parent=11 // pred_region
          _
        $region24: #{tpu_custom_call.1} parent=11 // pred_fallthru
          _
        // Predicated region
        $region25: #{tpu_custom_call.1} parent=11 // pred_check
          %p229 = pneg %p158
        $region26: #{tpu_custom_call.1} parent=11 // pred_check_branch
          %231 = sbr.rel (%p229) target = $region28
        $region27: #{tpu_custom_call.1} parent=11 // pred_region
          _
        $region28: #{tpu_custom_call.1} parent=11 // pred_fallthru
          _
        // Predicated region
        $region29: #{tpu_custom_call.1} parent=11 // pred_check
          %p232 = pneg %p179
        $region30: #{tpu_custom_call.1} parent=11 // pred_check_branch
          %234 = sbr.rel (%p232) target = $region32
        $region31: #{tpu_custom_call.1} parent=11 // pred_region
          _
        $region32: #{tpu_custom_call.1} parent=11 // pred_fallthru
          _
      $region12: #{tpu_custom_call.1} parent=5 // pred_fallthru
        _
      %p235 = scmp.lt.s32.totalorder %s22, 2
      // Predicated region
      $region33: #{tpu_custom_call.1} parent=5 // pred_check
        %p236 = pneg %p235
      $region34: #{tpu_custom_call.1} parent=5 // pred_check_branch
        %238 = sbr.rel (%p236) target = $region36
      $region35: #{tpu_custom_call.1} parent=5 // pred_region
        // Predicated region
        $region37: #{tpu_custom_call.1} parent=35 // pred_check
          %p239 = pneg %p42
        $region38: #{tpu_custom_call.1} parent=35 // pred_check_branch
          %241 = sbr.rel (%p239) target = $region40
        $region39: #{tpu_custom_call.1} parent=35 // pred_region
          %s242 = sand.u32 %s32, 1
          %s243 = scalar_lea.sflag [#allocation3], %s242
          %s244 = sand.u32 %s32, 1
          %s245 = smul.addr %s244, 32
          %s246 = scalar_lea.vmem [#allocation2], %s245
          %s248 = ssub.s32 512, 512
          %249 = vsyncadd %s243, %s248
          %s250 = smul.addr %s22, 4
          %s251 = smul.addr %s250, 128
          %s252 = scalar_lea.hbm %s0, %s251
          %s253 = sshll.u32 %s246, 4
          %s254 = int_to_ptr.vmem [resolvable:$true] %s253
          %259 = dma.hbm_to_vmem [thread:$0]  %s252, 512, %s254, %s243, 256, 256, 16
        $region40: #{tpu_custom_call.1} parent=35 // pred_fallthru
          _
        // Predicated region
        $region41: #{tpu_custom_call.1} parent=35 // pred_check
          %p260 = pneg %p68
        $region42: #{tpu_custom_call.1} parent=35 // pred_check_branch
          %262 = sbr.rel (%p260) target = $region44
        $region43: #{tpu_custom_call.1} parent=35 // pred_region
          %s263 = sand.u32 %s58, 1
          %s264 = scalar_lea.sflag [#allocation6], %s263
          %s265 = sand.u32 %s58, 1
          %s266 = smul.addr %s265, 32
          %s267 = scalar_lea.vmem [#allocation5], %s266
          %s269 = ssub.s32 512, 512
          %270 = vsyncadd %s264, %s269
          %s271 = smul.addr %s22, 4
          %s272 = smul.addr %s271, 128
          %s273 = scalar_lea.hbm %s1, %s272
          %s274 = sshll.u32 %s267, 4
          %s275 = int_to_ptr.vmem [resolvable:$true] %s274
          %280 = dma.hbm_to_vmem [thread:$0]  %s273, 512, %s275, %s264, 256, 256, 16
        $region44: #{tpu_custom_call.1} parent=35 // pred_fallthru
          _
      $region36: #{tpu_custom_call.1} parent=5 // pred_fallthru
        _
      %p281 = scmp.le.s32.totalorder 1, %s22
      %p282 = scmp.lt.s32.totalorder %s22, 3
      %p283 = pnand %p281, %p282
      %p284 = pneg %p283
      // Predicated region
      $region45: #{tpu_custom_call.1} parent=5 // pred_check
        _
      $region46: #{tpu_custom_call.1} parent=5 // pred_check_branch
        %286 = sbr.rel (%p283) target = $region48
      $region47: #{tpu_custom_call.1} parent=5 // pred_region
        %s287 = ssub.s32 %s22, 1
        %s288 = sand.u32 %s35, 1
        %s289 = scalar_lea.sflag [#allocation3], %s288
        %s290 = sand.u32 %s35, 1
        %s291 = smul.addr %s290, 32
        %s292 = scalar_lea.vmem [#allocation2], %s291
        // Predicated region
        $region49: #{tpu_custom_call.1} parent=47 // pred_check
          %p293 = pneg %p48
        $region50: #{tpu_custom_call.1} parent=47 // pred_check_branch
          %295 = sbr.rel (%p293) target = $region52
        $region51: #{tpu_custom_call.1} parent=47 // pred_region
          %296 = dma.done %s289, 512
        $region52: #{tpu_custom_call.1} parent=47 // pred_fallthru
          _
        %s297 = sand.u32 %s61, 1
        %s298 = scalar_lea.sflag [#allocation6], %s297
        %s299 = sand.u32 %s61, 1
        %s300 = smul.addr %s299, 32
        %s301 = scalar_lea.vmem [#allocation5], %s300
        // Predicated region
        $region53: #{tpu_custom_call.1} parent=47 // pred_check
          %p302 = pneg %p74
        $region54: #{tpu_custom_call.1} parent=47 // pred_check_branch
          %304 = sbr.rel (%p302) target = $region56
        $region55: #{tpu_custom_call.1} parent=47 // pred_region
          %305 = dma.done %s298, 512
        $region56: #{tpu_custom_call.1} parent=47 // pred_fallthru
          _
        %s306 = sand.u32 %s35, 1
        %s307 = scalar_lea.sflag [#allocation3], %s306
        %s308 = sand.u32 %s35, 1
        %s309 = smul.addr %s308, 32
        %s310 = scalar_lea.vmem [#allocation2], %s309
        %p311 = pneg %p48
        %p312 = pneg %p45
        %s313 = sand.u32 %s61, 1
        %s314 = scalar_lea.sflag [#allocation6], %s313
        %s315 = sand.u32 %s61, 1
        %s316 = smul.addr %s315, 32
        %s317 = scalar_lea.vmem [#allocation5], %s316
        %p318 = pneg %p74
        %p319 = pneg %p71
        %p320 = pneg %p95
        %p321 = pneg %p92
        %p322 = pneg %p116
        %p323 = pneg %p113
        %p324 = pneg %p137
        %p325 = pneg %p134
        %p326 = pneg %p158
        %p327 = pneg %p155
        %p328 = pneg %p179
        %p329 = pneg %p176
        %p330 = pneg %p205
        %p331 = pneg %p202
        %s332 = sand.u32 %s192, 1
        %s333 = scalar_lea.sflag [#allocation4], %s332
        %s334 = sand.u32 %s192, 1
        %s335 = smul.addr %s334, 32
        %s336 = scalar_lea.vmem [#allocation7], %s335
        %v337 = vld [vmem:[%s292] sm:$0xff]
        %v338 = vld [vmem:[%s292 + $0x8] sm:$0xff]
        %v339 = vld [vmem:[%s292 + $0x10] sm:$0xff]
        %v340 = vld [vmem:[%s292 + $0x18] sm:$0xff]
        %v341 = vld [vmem:[%s301] sm:$0xff]
        %v342 = vld [vmem:[%s301 + $0x8] sm:$0xff]
        %v343 = vld [vmem:[%s301 + $0x10] sm:$0xff]
        %v344 = vld [vmem:[%s301 + $0x18] sm:$0xff]
        %v345 = vlaneseq
        %v346 = vand.u32 %v345, 127
        %v347 = vadd.s32 %v346, 128
        %vm348 = vcmp.lt.s32.totalorder %v346, 0
        %v349 = vsub.s32 0, %v346
        %v350 = vsel %vm348, %v349, %v346
        %v351 = vshrl.u32 %v350, 4
        %v352 = vand.u32 %v350, 15
        %v353 = vsub.s32 0, %v352
        %v354 = vsel %vm348, %v353, %v352
        %vm355 = vcmp.lt.s32.totalorder %v347, 0
        %v356 = vsub.s32 0, %v347
        %v357 = vsel %vm355, %v356, %v347
        %v358 = vshrl.u32 %v357, 4
        %v359 = vand.u32 %v357, 15
        %v360 = vsub.s32 0, %v359
        %v361 = vsel %vm355, %v360, %v359
        %vm362 = vcmp.ne.s32.totalorder %v354, 0
        %vm363 = vcmp.ne.s32.totalorder %v361, 0
        %vm364 = vcmp.lt.s32.totalorder %v354, 0
        %vm365 = vcmp.lt.s32.totalorder %v361, 0
        %vm366 = vmand %vm364, %vm362
        %vm367 = vmand %vm365, %vm363
        %v368 = vadd.s32 %v354, 16
        %v369 = vadd.s32 %v361, 16
        %v370 = vsel %vm366, %v368, %v354
        %v371 = vsel %vm367, %v369, %v361
        %v372 = vadd.f32 %v337, %v338
        %373 = vadd.xlane.f32.xlu0 %v372
        %v374 = vpop.xlane.xlu0 %373
        %v375 = vadd.f32 %v339, %v340
        %376 = vadd.xlane.f32.xlu0 %v375
        %v377 = vpop.xlane.xlu0 %376
        %vm378 = vcmp.eq.s32.totalorder %v370, 0
        %vm379 = vcmp.eq.s32.totalorder %v371, 0
        %v380 = vsel %vm378, 1, 0
        %v381 = vsel %vm379, 1, 0
        %vm382 = vcmp.eq.s32.totalorder %v380, 1
        %vm383 = vcmp.eq.s32.totalorder %v381, 1
        %v384 = vsel %vm382, %v337, 0.0
        %v385 = vsel %vm383, %v338, 0.0
        %v386 = vsel %vm382, %v339, 0.0
        %v387 = vsel %vm383, %v340, 0.0
        %v388 = vadd.f32 %v384, %v385
        %389 = vadd.xlane.f32.xlu0 %v388
        %v390 = vpop.xlane.xlu0 %389
        %v391 = vadd.f32 %v386, %v387
        %392 = vadd.xlane.f32.xlu0 %v391
        %v393 = vpop.xlane.xlu0 %392
        %vm394 = vcmp.eq.s32.totalorder %v370, 15
        %vm395 = vcmp.eq.s32.totalorder %v371, 15
        %v396 = vsel %vm394, 1, 0
        %v397 = vsel %vm395, 1, 0
        %vm398 = vcmp.eq.s32.totalorder %v396, 1
        %vm399 = vcmp.eq.s32.totalorder %v397, 1
        %v400 = vsel %vm398, %v337, 0.0
        %v401 = vsel %vm399, %v338, 0.0
        %v402 = vsel %vm398, %v339, 0.0
        %v403 = vsel %vm399, %v340, 0.0
        %v404 = vadd.f32 %v400, %v401
        %405 = vadd.xlane.f32.xlu0 %v404
        %v406 = vpop.xlane.xlu0 %405
        %v407 = vadd.f32 %v402, %v403
        %408 = vadd.xlane.f32.xlu0 %v407
        %v409 = vpop.xlane.xlu0 %408
        %v410 = vadd.f32 %v341, %v342
        %411 = vadd.xlane.f32.xlu0 %v410
        %v412 = vpop.xlane.xlu0 %411
        %v413 = vadd.f32 %v343, %v344
        %414 = vadd.xlane.f32.xlu0 %v413
        %v415 = vpop.xlane.xlu0 %414
        %vm416 = vcmask 130048
        %v417 = vsel %vm416, %v337, 0.0
        %418 = vadd.xlane.f32.xlu0 %v417
        %v419 = vpop.xlane.xlu0 %418
        %v420 = vsel %vm416, %v339, 0.0
        %421 = vadd.xlane.f32.xlu0 %v420
        %v422 = vpop.xlane.xlu0 %421
        %425 = vrot.lane.b32.xlu0 %v338, 16
        %v426 = vpop.permute.xlu0 %425
        %427 = vrot.lane.b32.xlu0 %v340, 16
        %v428 = vpop.permute.xlu0 %427
        %v431 = vsel %vm416, %v426, 0.0
        %432 = vadd.xlane.f32.xlu0 %v431
        %v433 = vpop.xlane.xlu0 %432
        %v434 = vsel %vm416, %v428, 0.0
        %435 = vadd.xlane.f32.xlu0 %v434
        %v436 = vpop.xlane.xlu0 %435
        %vm437 = vcmp.eq.s32.totalorder %v346, 0
        %v438 = vsel %vm437, 1, 0
        %vm439 = vcmp.eq.s32.totalorder %v438, 1
        %v440 = vsel %vm439, %v337, 0.0
        %v441 = vsel %vm439, %v339, 0.0
        %v442 = vsel %vm416, %v440, 0.0
        %443 = vadd.xlane.f32.xlu0 %v442
        %v444 = vpop.xlane.xlu0 %443
        %v445 = vsel %vm416, %v441, 0.0
        %446 = vadd.xlane.f32.xlu0 %v445
        %v447 = vpop.xlane.xlu0 %446
        %vm448 = vcmp.eq.s32.totalorder %v346, 15
        %v449 = vsel %vm448, 1, 0
        %vm450 = vcmp.eq.s32.totalorder %v449, 1
        %v451 = vsel %vm450, %v337, 0.0
        %v452 = vsel %vm450, %v339, 0.0
        %v453 = vsel %vm416, %v451, 0.0
        %454 = vadd.xlane.f32.xlu0 %v453
        %v455 = vpop.xlane.xlu0 %454
        %v456 = vsel %vm416, %v452, 0.0
        %457 = vadd.xlane.f32.xlu0 %v456
        %v458 = vpop.xlane.xlu0 %457
        %v459 = vsel %vm439, %v426, 0.0
        %v460 = vsel %vm439, %v428, 0.0
        %v461 = vsel %vm416, %v459, 0.0
        %462 = vadd.xlane.f32.xlu0 %v461
        %v463 = vpop.xlane.xlu0 %462
        %v464 = vsel %vm416, %v460, 0.0
        %465 = vadd.xlane.f32.xlu0 %v464
        %v466 = vpop.xlane.xlu0 %465
        %v467 = vsel %vm450, %v426, 0.0
        %v468 = vsel %vm450, %v428, 0.0
        %v469 = vsel %vm416, %v467, 0.0
        %470 = vadd.xlane.f32.xlu0 %v469
        %v471 = vpop.xlane.xlu0 %470
        %v472 = vsel %vm416, %v468, 0.0
        %473 = vadd.xlane.f32.xlu0 %v472
        %v474 = vpop.xlane.xlu0 %473
        %v477 = vlaneseq
        %v478 = vshrl.u32 %v477, 7
        %v479 = vsub.s32 %v346, %v478
        %v480 = vrot.slane %v374, %v479
        %v481 = vadd.s32 %v346, 4294967288
        %v482 = vlaneseq
        %v483 = vshrl.u32 %v482, 7
        %v484 = vsub.s32 %v481, %v483
        %v485 = vrot.slane %v377, %v484
        %vm486 = vcmask 130112
        %v487 = vsel %vm486, %v485, %v480
        %v491 = vlaneseq
        %v492 = vshrl.u32 %v491, 7
        %v493 = vsub.s32 %v346, %v492
        %v494 = vrot.slane %v433, %v493
        %v495 = vlaneseq
        %v496 = vshrl.u32 %v495, 7
        %v497 = vsub.s32 %v481, %v496
        %v498 = vrot.slane %v436, %v497
        %v499 = vsel %vm486, %v498, %v494
        %v503 = vlaneseq
        %v504 = vshrl.u32 %v503, 7
        %v505 = vsub.s32 %v346, %v504
        %v506 = vrot.slane %v419, %v505
        %v507 = vlaneseq
        %v508 = vshrl.u32 %v507, 7
        %v509 = vsub.s32 %v481, %v508
        %v510 = vrot.slane %v422, %v509
        %v511 = vsel %vm486, %v510, %v506
        %v515 = vlaneseq
        %v516 = vshrl.u32 %v515, 7
        %v517 = vsub.s32 %v346, %v516
        %v518 = vrot.slane %v406, %v517
        %v519 = vlaneseq
        %v520 = vshrl.u32 %v519, 7
        %v521 = vsub.s32 %v481, %v520
        %v522 = vrot.slane %v409, %v521
        %v523 = vsel %vm486, %v522, %v518
        %v527 = vlaneseq
        %v528 = vshrl.u32 %v527, 7
        %v529 = vsub.s32 %v346, %v528
        %v530 = vrot.slane %v390, %v529
        %v531 = vlaneseq
        %v532 = vshrl.u32 %v531, 7
        %v533 = vsub.s32 %v481, %v532
        %v534 = vrot.slane %v393, %v533
        %v535 = vsel %vm486, %v534, %v530
        %v539 = vlaneseq
        %v540 = vshrl.u32 %v539, 7
        %v541 = vsub.s32 %v346, %v540
        %v542 = vrot.slane %v471, %v541
        %v543 = vlaneseq
        %v544 = vshrl.u32 %v543, 7
        %v545 = vsub.s32 %v481, %v544
        %v546 = vrot.slane %v474, %v545
        %v547 = vsel %vm486, %v546, %v542
        %v551 = vlaneseq
        %v552 = vshrl.u32 %v551, 7
        %v553 = vsub.s32 %v346, %v552
        %v554 = vrot.slane %v463, %v553
        %v555 = vlaneseq
        %v556 = vshrl.u32 %v555, 7
        %v557 = vsub.s32 %v481, %v556
        %v558 = vrot.slane %v466, %v557
        %v559 = vsel %vm486, %v558, %v554
        %v563 = vlaneseq
        %v564 = vshrl.u32 %v563, 7
        %v565 = vsub.s32 %v346, %v564
        %v566 = vrot.slane %v455, %v565
        %v567 = vlaneseq
        %v568 = vshrl.u32 %v567, 7
        %v569 = vsub.s32 %v481, %v568
        %v570 = vrot.slane %v458, %v569
        %v571 = vsel %vm486, %v570, %v566
        %v575 = vlaneseq
        %v576 = vshrl.u32 %v575, 7
        %v577 = vsub.s32 %v346, %v576
        %v578 = vrot.slane %v444, %v577
        %v579 = vlaneseq
        %v580 = vshrl.u32 %v579, 7
        %v581 = vsub.s32 %v481, %v580
        %v582 = vrot.slane %v447, %v581
        %v583 = vsel %vm486, %v582, %v578
        %v587 = vlaneseq
        %v588 = vshrl.u32 %v587, 7
        %v589 = vsub.s32 %v346, %v588
        %v590 = vrot.slane %v412, %v589
        %v591 = vlaneseq
        %v592 = vshrl.u32 %v591, 7
        %v593 = vsub.s32 %v481, %v592
        %v594 = vrot.slane %v415, %v593
        %v595 = vsel %vm486, %v594, %v590
        %vm597 = vcmask 1040384
        %v598 = vsel %vm597, %v487, %v499
        %vm599 = vcmask 1041408
        %v600 = vsel %vm599, %v598, %v511
        %vm601 = vcmask 1042432
        %v602 = vsel %vm601, %v600, %v523
        %vm603 = vcmask 1043456
        %v604 = vsel %vm603, %v602, %v535
        %vm605 = vcmask 1044480
        %v606 = vsel %vm605, %v604, %v547
        %vm607 = vcmask 1045504
        %v608 = vsel %vm607, %v606, %v559
        %vm609 = vcmask 1046528
        %v610 = vsel %vm609, %v608, %v571
        %v611 = vsel %vm597, %v583, %v595
        %v612 = vld [vmem:[%s2] sm:$0xff]
        %v613 = vld [vmem:[%s2 + $0x8] sm:$0xff]
        %v615 = vsel %vm416, %v610, 0
        %v618 = vsel %vm416, %v611, 0
        %620 = vmatprep.subr.mxu0 0.0
        %621 = vmatpush1.msra.mxu0 %v612
        %622 = vmatprep.subr.mxu0 0.0
        %623 = vmatpush1.msra.mxu0 %v613
        %624 = vmatprep.subr.mxu0 0.0
        %625 = vmatpush1.msra.mxu0 0.0
        %626 = vmatprep.subr.mxu0 0.0
        %627 = vmatpush1.msra.mxu0 0.0
        %628 = vmatprep.subr.mxu0 0.0
        %629 = vmatpush1.msra.mxu0 0.0
        %630 = vmatprep.subr.mxu0 0.0
        %631 = vmatpush1.msra.mxu0 0.0
        %632 = vmatprep.subr.mxu0 0.0
        %633 = vmatpush1.msra.mxu0 0.0
        %634 = vmatprep.subr.mxu0 0.0
        %635 = vmatpush1.msra.mxu0 0.0
        %636 = vmatprep.subr.mxu0 0.0
        %637 = vmatpush1.msra.mxu0 0.0
        %638 = vmatprep.subr.mxu0 0.0
        %639 = vmatpush1.msra.mxu0 0.0
        %640 = vmatprep.subr.mxu0 0.0
        %641 = vmatpush1.msra.mxu0 0.0
        %642 = vmatprep.subr.mxu0 0.0
        %643 = vmatpush1.msra.mxu0 0.0
        %644 = vmatprep.subr.mxu0 0.0
        %645 = vmatpush1.msra.mxu0 0.0
        %646 = vmatprep.subr.mxu0 0.0
        %647 = vmatpush1.msra.mxu0 0.0
        %648 = vmatprep.subr.mxu0 0.0
        %649 = vmatpush1.msra.mxu0 0.0
        %650 = vmatprep.subr.mxu0 0.0
        %651 = vmatpush1.msra.mxu0 0.0
        %652 = vmatprep.subr.mxu0 0.0
        %653 = vmatpush1.msra.mxu0 0.0
        %654 = vmatprep.subr.mxu0 0.0
        %655 = vmatpush1.msra.mxu0 0.0
        %656 = vmatprep.subr.mxu0 0.0
        %657 = vmatpush1.msra.mxu0 0.0
        %658 = vmatprep.subr.mxu0 0.0
        %659 = vmatpush1.msra.mxu0 0.0
        %660 = vmatprep.subr.mxu0 0.0
        %661 = vmatpush1.msra.mxu0 0.0
        %662 = vmatprep.subr.mxu0 0.0
        %663 = vmatpush1.msra.mxu0 0.0
        %664 = vmatprep.subr.mxu0 0.0
        %665 = vmatpush1.msra.mxu0 0.0
        %666 = vmatprep.subr.mxu0 0.0
        %667 = vmatpush1.msra.mxu0 0.0
        %668 = vmatprep.subr.mxu0 0.0
        %669 = vmatpush1.msra.mxu0 0.0
        %670 = vmatprep.subr.mxu0 0.0
        %671 = vmatpush1.msra.mxu0 0.0
        %672 = vmatprep.subr.mxu0 0.0
        %673 = vmatpush1.msra.mxu0 0.0
        %674 = vmatprep.subr.mxu0 0.0
        %675 = vmatpush1.msra.mxu0 0.0
        %676 = vmatprep.subr.mxu0 0.0
        %677 = vmatpush1.msra.mxu0 0.0
        %678 = vmatprep.subr.mxu0 0.0
        %679 = vmatpush1.msra.mxu0 0.0
        %680 = vmatprep.subr.mxu0 0.0
        %681 = vmatpush1.msra.mxu0 0.0
        %682 = vmatprep.subr.mxu0 0.0
        %683 = vmatpush1.msra.mxu0 0.0
        %684 = vmatprep.mubr.f32.mxu0 0.0
        %685 = vmatmul.mubr.f32.gmra.mrb[0].mxu0 %v615
        %v686 = vpop.f32.mrb[0].mxu0
        %v687 = vadd.f32 0.0, %v686
        %v688 = vpop.f32.mrb[0].mxu0
        %689 = vmatprep.mubr.f32.mxu0 0.0
        %690 = vmatmul.mubr.f32.gmra.mrb[0].mxu0 %v618
        %v691 = vpop.f32.mrb[0].mxu0
        %v692 = vadd.f32 0.0, %v691
        %v693 = vpop.f32.mrb[0].mxu0
        %694 = vdwg.mxu0
        %v695 = vld [vmem:[%s3] sm:$0xff]
        %v696 = vld [vmem:[%s3 + $0x8] sm:$0x3]
        %v697 = vmul.f32 %v687, %v695
        %v698 = vmul.f32 %v692, %v696
        %vm699 = vcmask 15360
        %v700 = vsel %vm699, %v697, 0.0
        %vm701 = vcmask 9216
        %v702 = vsel %vm701, %v698, 0.0
        %v703 = vadd.f32 %v700, %v702
        %v704 = vrot.slane %v703, 4
        %v705 = vadd.f32 %v703, %v704
        %v706 = vrot.slane %v705, 2
        %v707 = vadd.f32 %v705, %v706
        %v708 = vrot.slane %v707, 1
        %v709 = vadd.f32 %v707, %v708
        %v710 = vld [vmem:[%s4] sm:$0x1]
        %v711 = vadd.f32 %v709, %v710
        %v712 = vld [vmem:[%s5] sm:$0x3]
        %v713 = vld [vmem:[%s6] sm:$0x1]
        %v715 = vsel %vm699, %v711, 0
        %v718 = vsel %vm599, %v712, 0
        %720 = vmatprep.subr.mxu0 0.0
        %721 = vmatpush1.msra.mxu0 %v718
        %722 = vmatprep.subr.mxu0 0.0
        %723 = vmatpush1.msra.mxu0 0.0
        %724 = vmatprep.subr.mxu0 0.0
        %725 = vmatpush1.msra.mxu0 0.0
        %726 = vmatprep.subr.mxu0 0.0
        %727 = vmatpush1.msra.mxu0 0.0
        %728 = vmatprep.subr.mxu0 0.0
        %729 = vmatpush1.msra.mxu0 0.0
        %730 = vmatprep.subr.mxu0 0.0
        %731 = vmatpush1.msra.mxu0 0.0
        %732 = vmatprep.subr.mxu0 0.0
        %733 = vmatpush1.msra.mxu0 0.0
        %734 = vmatprep.subr.mxu0 0.0
        %735 = vmatpush1.msra.mxu0 0.0
        %736 = vmatprep.subr.mxu0 0.0
        %737 = vmatpush1.msra.mxu0 0.0
        %738 = vmatprep.subr.mxu0 0.0
        %739 = vmatpush1.msra.mxu0 0.0
        %740 = vmatprep.subr.mxu0 0.0
        %741 = vmatpush1.msra.mxu0 0.0
        %742 = vmatprep.subr.mxu0 0.0
        %743 = vmatpush1.msra.mxu0 0.0
        %744 = vmatprep.subr.mxu0 0.0
        %745 = vmatpush1.msra.mxu0 0.0
        %746 = vmatprep.subr.mxu0 0.0
        %747 = vmatpush1.msra.mxu0 0.0
        %748 = vmatprep.subr.mxu0 0.0
        %749 = vmatpush1.msra.mxu0 0.0
        %750 = vmatprep.subr.mxu0 0.0
        %751 = vmatpush1.msra.mxu0 0.0
        %752 = vmatprep.subr.mxu0 0.0
        %753 = vmatpush1.msra.mxu0 0.0
        %754 = vmatprep.subr.mxu0 0.0
        %755 = vmatpush1.msra.mxu0 0.0
        %756 = vmatprep.subr.mxu0 0.0
        %757 = vmatpush1.msra.mxu0 0.0
        %758 = vmatprep.subr.mxu0 0.0
        %759 = vmatpush1.msra.mxu0 0.0
        %760 = vmatprep.subr.mxu0 0.0
        %761 = vmatpush1.msra.mxu0 0.0
        %762 = vmatprep.subr.mxu0 0.0
        %763 = vmatpush1.msra.mxu0 0.0
        %764 = vmatprep.subr.mxu0 0.0
        %765 = vmatpush1.msra.mxu0 0.0
        %766 = vmatprep.subr.mxu0 0.0
        %767 = vmatpush1.msra.mxu0 0.0
        %768 = vmatprep.subr.mxu0 0.0
        %769 = vmatpush1.msra.mxu0 0.0
        %770 = vmatprep.subr.mxu0 0.0
        %771 = vmatpush1.msra.mxu0 0.0
        %772 = vmatprep.subr.mxu0 0.0
        %773 = vmatpush1.msra.mxu0 0.0
        %774 = vmatprep.subr.mxu0 0.0
        %775 = vmatpush1.msra.mxu0 0.0
        %776 = vmatprep.subr.mxu0 0.0
        %777 = vmatpush1.msra.mxu0 0.0
        %778 = vmatprep.subr.mxu0 0.0
        %779 = vmatpush1.msra.mxu0 0.0
        %780 = vmatprep.subr.mxu0 0.0
        %781 = vmatpush1.msra.mxu0 0.0
        %782 = vmatprep.subr.mxu0 0.0
        %783 = vmatpush1.msra.mxu0 0.0
        %784 = vmatprep.mubr.f32.mxu0 0.0
        %785 = vmatmul.mubr.f32.gmra.mrb[0].mxu0 %v715
        %v786 = vpop.f32.mrb[0].mxu0
        %v787 = vadd.f32 %v713, %v786
        %v788 = vpop.f32.mrb[0].mxu0
        %789 = vdwg.mxu0
        %v790 = vxor.u32 %v787, 2147483648
        %v791 = vmul.f32 %v790, 1.442695
        %v792 = vpow.pop %v791
        %v793 = vadd.f32 %v792, 1.0
        %v794 = vrcp.pop %v793
        %v795 = vmul.f32 1.0, %v794
        %v796 = vsub.f32 %v795, 0.5
        %v797 = vlaneseq
        %v798 = vshrl.u32 %v797, 7
        %v799 = vsub.s32 0, %v798
        %v800 = vrot.slane %v796, %v799
        %802 = vbcast.lane.b32.xlu0 %v800, 256
        %v803 = vpop.permute.xlu0 %802
        %s805 = sor.u32 256, 8
        %806 = vbcast.lane.b32.xlu0 %v800, %s805
        %v807 = vpop.permute.xlu0 %806
        %v808 = vadd.f32 %v803, 1.0
        %v809 = vadd.f32 %v807, 1.0
        %v810 = vmul.f32 %v337, %v808
        %v811 = vmul.f32 %v338, %v808
        %v812 = vmul.f32 %v339, %v809
        %v813 = vmul.f32 %v340, %v809
        %814 = vst [vmem:[%s336] sm:$0xff] %v810
        %815 = vst [vmem:[%s336 + $0x8] sm:$0xff] %v811
        %816 = vst [vmem:[%s336 + $0x10] sm:$0xff] %v812
        %817 = vst [vmem:[%s336 + $0x18] sm:$0xff] %v813
        %s818 = sand.u32 %s192, 1
        %s819 = scalar_lea.sflag [#allocation4], %s818
        %s820 = sand.u32 %s192, 1
        %s821 = smul.addr %s820, 32
        %s822 = scalar_lea.vmem [#allocation7], %s821
        // Predicated region
        $region57: #{tpu_custom_call.1} parent=47 // pred_check
          %p823 = pneg %p202
        $region58: #{tpu_custom_call.1} parent=47 // pred_check_branch
          %825 = sbr.rel (%p823) target = $region60
        $region59: #{tpu_custom_call.1} parent=47 // pred_region
          %s827 = ssub.s32 512, 512
          %828 = vsyncadd %s819, %s827
          %s829 = smul.addr %s27, 4
          %s830 = smul.addr %s829, 128
          %s831 = scalar_lea.hbm %s7, %s830
          %s832 = sshll.u32 %s822, 4
          %s833 = int_to_ptr.vmem [resolvable:$true] %s832
          %838 = dma.vmem_to_hbm [thread:$0]  %s833, 512, %s831, %s819, 256, 256, 16
        $region60: #{tpu_custom_call.1} parent=47 // pred_fallthru
          _
      $region48: #{tpu_custom_call.1} parent=5 // pred_fallthru
        _
      %p839 = scmp.le.s32.totalorder 2, %s22
      // Predicated region
      $region61: #{tpu_custom_call.1} parent=5 // pred_check
        %p840 = pneg %p839
      $region62: #{tpu_custom_call.1} parent=5 // pred_check_branch
        %842 = sbr.rel (%p840) target = $region64
      $region63: #{tpu_custom_call.1} parent=5 // pred_region
        %s843 = ssub.s32 %s22, 2
        // Predicated region
        $region65: #{tpu_custom_call.1} parent=63 // pred_check
          %p844 = pneg %p208
        $region66: #{tpu_custom_call.1} parent=63 // pred_check_branch
          %846 = sbr.rel (%p844) target = $region68
        $region67: #{tpu_custom_call.1} parent=63 // pred_region
          %s847 = sand.u32 %s193, 1
          %s848 = scalar_lea.sflag [#allocation4], %s847
          %s849 = sand.u32 %s193, 1
          %s850 = smul.addr %s849, 32
          %s851 = scalar_lea.vmem [#allocation7], %s850
          %852 = dma.done %s848, 512
        $region68: #{tpu_custom_call.1} parent=63 // pred_fallthru
          _
      $region64: #{tpu_custom_call.1} parent=5 // pred_fallthru
        _
    $region6: #{tpu_custom_call.1} parent=1 // loop_footer
      %s26 = sadd.s32 1, %s22
    $region7: #{tpu_custom_call.1} parent=1 // loop_footer_branch
      %21 = sbr.rel target = $region3
    $region8: #{tpu_custom_call.1} parent=1 // loop_exit
      _
    %853 = vsyncpa [#allocation3], 1
    %s854 = scalar_lea.sflag [#allocation3], 1
    %855 = vsyncpa %s854, 1
    %856 = vsyncpa [#allocation6], 1
    %s857 = scalar_lea.sflag [#allocation6], 1
    %858 = vsyncpa %s857, 1
    %859 = vsyncpa [#allocation4], 1
    %s860 = scalar_lea.sflag [#allocation4], 1
    %861 = vsyncpa %s860, 1

</llo_original>
